<compile_context>
chip_gen: v7x
topology: tpu7x:2x2x1
jax: 0.10.0
libtpu: 0.0.40
codegen_flags: <defaults>
</compile_context>

<pallas_src>
import jax
import jax.numpy as jnp
from jax.experimental import pallas as pl
from jax.experimental.pallas import tpu as pltpu

# -----------------------------------------------------------------------------
# Model config (mirrors ClassifierModel(sizes=[32, 32], dropout=p))
#   LazyLinear(32)  : D_in -> 32, ReLU, Dropout
#   Linear(32, 32)  : 32   -> 32, ReLU, Dropout
#   Linear(32, 2)   : 32   -> 2,  Softmax(dim=1)
# -----------------------------------------------------------------------------
D_IN = 16
SIZES = [32, 32]
N_CLASSES = 2

BATCH = 16          # demo batch
MAX_TB = 2048       # lane-axis batch tile if B ever grows (multiple of 128)


def mlp_softmax_kernel(xT_ref, w1_ref, b1_ref, w2_ref, b2_ref, w3_ref, b3_ref, o_ref):
    """Fused MLP forward, transposed layout (batch on lanes).

    xT_ref : [D_IN, TB]          activations^T
    w*_ref : [out, in]           PyTorch-native weight layout
    b*_ref : [out, 1]            bias as a column (broadcast over lanes)
    o_ref  : [N_CLASSES, TB]     class probabilities^T

    Dropout is identity at inference time (nn.Dropout eval mode).
    """
    xT = xT_ref[...]

    # Layer 1: LazyLinear(D_IN -> 32) + ReLU   (Dropout = identity)
    h = jnp.dot(w1_ref[...], xT, preferred_element_type=jnp.float32) + b1_ref[...]
    h = jnp.maximum(h, 0.0)

    # Layer 2: Linear(32 -> 32) + ReLU         (Dropout = identity)
    h = jnp.dot(w2_ref[...], h, preferred_element_type=jnp.float32) + b2_ref[...]
    h = jnp.maximum(h, 0.0)

    # Output layer: Linear(32 -> 2)
    logits = jnp.dot(w3_ref[...], h, preferred_element_type=jnp.float32) + b3_ref[...]

    # 2-class softmax == sigmoid of the logit difference (no cross-lane reductions).
    d = logits[1:2, :] - logits[0:1, :]          # [1, TB]
    p1 = 1.0 / (1.0 + jnp.exp(-d))               # stable: overflow -> inf -> p1 == 0
    o_ref[0:1, :] = 1.0 - p1
    o_ref[1:2, :] = p1


def classifier_forward(x, params, *, max_tb=MAX_TB):
    """x: [B, D_IN] f32 -> probs: [B, N_CLASSES] f32."""
    w1, b1, w2, b2, w3, b3 = params            # PyTorch layout: w [out,in], b [out]
    B, d_in = x.shape
    assert d_in == D_IN

    # Batch on lanes: lane-dense input and output slabs.
    xT = x.T                                    # [D_IN, B]

    # Single grid step for small batches; big lane tiles (amortize the ~0.35 us
    # per-step overhead) if B ever scales.  Pad so no rows are dropped.
    tb = B if B <= max_tb else max_tb
    num_tiles = pl.cdiv(B, tb)
    b_padded = num_tiles * tb
    if b_padded != B:
        xT = jnp.pad(xT, ((0, 0), (0, b_padded - B)))

    b1c = b1.reshape(-1, 1)
    b2c = b2.reshape(-1, 1)
    b3c = b3.reshape(-1, 1)

    # Weights/biases are tiny constants: full block, same (0,0) index every step
    # so the pipeline dedupes their DMAs across grid iterations.
    rep = lambda a: pl.BlockSpec(a.shape, lambda i: (0, 0))

    outT = pl.pallas_call(
        mlp_softmax_kernel,
        out_shape=jax.ShapeDtypeStruct((N_CLASSES, b_padded), jnp.float32),
        grid=(num_tiles,),
        in_specs=[
            pl.BlockSpec((D_IN, tb), lambda i: (0, i)),      # x^T tile (lane-dense)
            rep(w1), rep(b1c),
            rep(w2), rep(b2c),
            rep(w3), rep(b3c),
        ],
        out_specs=pl.BlockSpec((N_CLASSES, tb), lambda i: (0, i)),
        compiler_params=pltpu.CompilerParams(
            # Only shard the batch across cores when tiles are large enough to
            # amortize per-core fixed cost (v7x guidance from the review).
            dimension_semantics=("parallel",) if num_tiles > 1 else ("arbitrary",)
        ),
    )(xT, w1, b1c, w2, b2c, w3, b3c)

    return outT[:, :B].T                        # [B, N_CLASSES]


def init_params(key):
    """Deterministic synthetic init, PyTorch nn.Linear layout/distribution."""
    ks = jax.random.split(key, 6)

    def linear(kw, kb, fan_in, fan_out):
        bound = 1.0 / jnp.sqrt(jnp.asarray(fan_in, jnp.float32))
        w = jax.random.uniform(kw, (fan_out, fan_in), jnp.float32, -bound, bound)
        b = jax.random.uniform(kb, (fan_out,), jnp.float32, -bound, bound)
        return w, b

    w1, b1 = linear(ks[0], ks[1], D_IN, SIZES[0])
    w2, b2 = linear(ks[2], ks[3], SIZES[0], SIZES[1])
    w3, b3 = linear(ks[4], ks[5], SIZES[1], N_CLASSES)
    return (w1, b1, w2, b2, w3, b3)


def reference_forward(x, params):
    """Plain-JAX reference matching the PyTorch module (y = x @ W.T + b)."""
    w1, b1, w2, b2, w3, b3 = params
    h = jnp.maximum(x @ w1.T + b1, 0.0)
    h = jnp.maximum(h @ w2.T + b2, 0.0)
    logits = h @ w3.T + b3
    return jax.nn.softmax(logits, axis=1)


if __name__ == "__main__":
    key = jax.random.PRNGKey(0)
    kx, kp = jax.random.split(key)

    x = jax.random.normal(kx, (BATCH, D_IN), dtype=jnp.float32)
    params = init_params(kp)

    # TODO(synk): Dropout is implemented as identity (eval-mode semantics); training-mode
    # stochastic dropout would require pltpu.prng_seed/prng_random_bits inside the kernel.
    probs = jax.block_until_ready(classifier_forward(x, params))

    ref = reference_forward(x, params)
    assert probs.shape == (BATCH, N_CLASSES)
    assert jnp.allclose(probs, ref, atol=1e-5, rtol=1e-5), "mismatch vs reference"
    assert jnp.allclose(jnp.sum(probs, axis=1), 1.0, atol=1e-6), "rows must sum to 1"

    print("KERNEL_OK")
</pallas_src>

<mosaic_0001>
module attributes {stable_mosaic.version = 11 : i64} {
  func.func @mlp_softmax_kernel(%arg0: i32, %arg1: memref<16x16xf32, #tpu.memory_space<vmem>>, %arg2: memref<32x16xf32, #tpu.memory_space<vmem>>, %arg3: memref<32x1xf32, #tpu.memory_space<vmem>>, %arg4: memref<32x32xf32, #tpu.memory_space<vmem>>, %arg5: memref<32x1xf32, #tpu.memory_space<vmem>>, %arg6: memref<2x32xf32, #tpu.memory_space<vmem>>, %arg7: memref<2x1xf32, #tpu.memory_space<vmem>>, %arg8: memref<2x16xf32, #tpu.memory_space<vmem>>) attributes {dimension_semantics = [#tpu.dimension_semantics<arbitrary>], iteration_bounds = array<i64: 1>, scalar_prefetch = 0 : i64, scratch_operands = 0 : i64, tpu.core_type = #tpu.core_type<tc>, window_params = [{transform_indices = @transform_0, window_bounds = array<i64: 16, 16>}, {pipeline_mode = #tpu.pipeline_mode<synchronous>, transform_indices = @transform_1, window_bounds = array<i64: 32, 16>}, {pipeline_mode = #tpu.pipeline_mode<synchronous>, transform_indices = @transform_2, window_bounds = array<i64: 32, 1>}, {pipeline_mode = #tpu.pipeline_mode<synchronous>, transform_indices = @transform_3, window_bounds = array<i64: 32, 32>}, {pipeline_mode = #tpu.pipeline_mode<synchronous>, transform_indices = @transform_4, window_bounds = array<i64: 32, 1>}, {pipeline_mode = #tpu.pipeline_mode<synchronous>, transform_indices = @transform_5, window_bounds = array<i64: 2, 32>}, {pipeline_mode = #tpu.pipeline_mode<synchronous>, transform_indices = @transform_6, window_bounds = array<i64: 2, 1>}, {transform_indices = @transform_7, window_bounds = array<i64: 2, 16>}]} {
    %c0 = arith.constant 0 : index
    %c0_0 = arith.constant 0 : index
    %0 = vector.load %arg1[%c0, %c0_0] : memref<16x16xf32, #tpu.memory_space<vmem>>, vector<16x16xf32>
    %c0_1 = arith.constant 0 : index
    %c0_2 = arith.constant 0 : index
    %1 = vector.load %arg2[%c0_1, %c0_2] : memref<32x16xf32, #tpu.memory_space<vmem>>, vector<32x16xf32>
    %cst = arith.constant dense<0.000000e+00> : vector<32x16xf32>
    %2 = tpu.matmul %1, %0, %cst {dimension_numbers = #tpu.dot_dimension_numbers<[1], [0], [0], [1], [0, 0, 1, 1], [], []>} : vector<32x16xf32>, vector<16x16xf32>, vector<32x16xf32> -> vector<32x16xf32>
    %c0_3 = arith.constant 0 : index
    %c0_4 = arith.constant 0 : index
    %3 = vector.load %arg3[%c0_3, %c0_4] : memref<32x1xf32, #tpu.memory_space<vmem>>, vector<32x1xf32>
    %4 = vector.broadcast %3 : vector<32x1xf32> to vector<32x16xf32>
    %5 = arith.addf %2, %4 : vector<32x16xf32>
    %cst_5 = arith.constant 0.000000e+00 : f32
    %6 = vector.broadcast %cst_5 : f32 to vector<32x16xf32>
    %7 = arith.maximumf %5, %6 : vector<32x16xf32>
    %c0_6 = arith.constant 0 : index
    %c0_7 = arith.constant 0 : index
    %8 = vector.load %arg4[%c0_6, %c0_7] : memref<32x32xf32, #tpu.memory_space<vmem>>, vector<32x32xf32>
    %cst_8 = arith.constant dense<0.000000e+00> : vector<32x16xf32>
    %9 = tpu.matmul %8, %7, %cst_8 {dimension_numbers = #tpu.dot_dimension_numbers<[1], [0], [0], [1], [0, 0, 1, 1], [], []>} : vector<32x32xf32>, vector<32x16xf32>, vector<32x16xf32> -> vector<32x16xf32>
    %c0_9 = arith.constant 0 : index
    %c0_10 = arith.constant 0 : index
    %10 = vector.load %arg5[%c0_9, %c0_10] : memref<32x1xf32, #tpu.memory_space<vmem>>, vector<32x1xf32>
    %11 = vector.broadcast %10 : vector<32x1xf32> to vector<32x16xf32>
    %12 = arith.addf %9, %11 : vector<32x16xf32>
    %cst_11 = arith.constant 0.000000e+00 : f32
    %13 = vector.broadcast %cst_11 : f32 to vector<32x16xf32>
    %14 = arith.maximumf %12, %13 : vector<32x16xf32>
    %c0_12 = arith.constant 0 : index
    %c0_13 = arith.constant 0 : index
    %15 = vector.load %arg6[%c0_12, %c0_13] : memref<2x32xf32, #tpu.memory_space<vmem>>, vector<2x32xf32>
    %cst_14 = arith.constant dense<0.000000e+00> : vector<2x16xf32>
    %16 = tpu.matmul %15, %14, %cst_14 {dimension_numbers = #tpu.dot_dimension_numbers<[1], [0], [0], [1], [0, 0, 1, 1], [], []>} : vector<2x32xf32>, vector<32x16xf32>, vector<2x16xf32> -> vector<2x16xf32>
    %c0_15 = arith.constant 0 : index
    %c0_16 = arith.constant 0 : index
    %17 = vector.load %arg7[%c0_15, %c0_16] : memref<2x1xf32, #tpu.memory_space<vmem>>, vector<2x1xf32>
    %18 = vector.broadcast %17 : vector<2x1xf32> to vector<2x16xf32>
    %19 = arith.addf %16, %18 : vector<2x16xf32>
    %20 = vector.extract_strided_slice %19 {offsets = [1, 0], sizes = [1, 16], strides = [1, 1]} : vector<2x16xf32> to vector<1x16xf32>
    %21 = vector.extract_strided_slice %19 {offsets = [0, 0], sizes = [1, 16], strides = [1, 1]} : vector<2x16xf32> to vector<1x16xf32>
    %22 = arith.subf %20, %21 : vector<1x16xf32>
    %cst_17 = arith.constant 0.000000e+00 : f32
    %23 = vector.broadcast %cst_17 : f32 to vector<1x16xf32>
    %24 = arith.subf %23, %22 : vector<1x16xf32>
    %25 = math.exp %24 : vector<1x16xf32>
    %cst_18 = arith.constant 1.000000e+00 : f32
    %26 = vector.broadcast %cst_18 : f32 to vector<1x16xf32>
    %27 = arith.addf %26, %25 : vector<1x16xf32>
    %cst_19 = arith.constant 1.000000e+00 : f32
    %28 = vector.broadcast %cst_19 : f32 to vector<1x16xf32>
    %29 = arith.divf %28, %27 : vector<1x16xf32>
    %cst_20 = arith.constant 1.000000e+00 : f32
    %30 = vector.broadcast %cst_20 : f32 to vector<1x16xf32>
    %31 = arith.subf %30, %29 : vector<1x16xf32>
    %c0_21 = arith.constant 0 : index
    %c0_22 = arith.constant 0 : index
    %32 = vector.load %arg8[%c0_21, %c0_22] : memref<2x16xf32, #tpu.memory_space<vmem>>, vector<1x16xf32>
    tpu.vector_store %arg8[%c0_21, %c0_22], %31 {strides = array<i32>} : memref<2x16xf32, #tpu.memory_space<vmem>>, vector<1x16xf32>,
    %c1 = arith.constant 1 : index
    %c0_23 = arith.constant 0 : index
    %33 = vector.load %arg8[%c1, %c0_23] : memref<2x16xf32, #tpu.memory_space<vmem>>, vector<1x16xf32>
    tpu.vector_store %arg8[%c1, %c0_23], %29 {strides = array<i32>} : memref<2x16xf32, #tpu.memory_space<vmem>>, vector<1x16xf32>,
    return
  }
  func.func @transform_0(%arg0: i32) -> (i32, i32) {
    %c0_i32 = arith.constant 0 : i32
    %c0_i32_0 = arith.constant 0 : i32
    return %c0_i32, %arg0 : i32, i32
  }
  func.func @transform_1(%arg0: i32) -> (i32, i32) {
    %c0_i32 = arith.constant 0 : i32
    %c0_i32_0 = arith.constant 0 : i32
    %c0_i32_1 = arith.constant 0 : i32
    return %c0_i32, %c0_i32_0 : i32, i32
  }
  func.func @transform_2(%arg0: i32) -> (i32, i32) {
    %c0_i32 = arith.constant 0 : i32
    %c0_i32_0 = arith.constant 0 : i32
    %c0_i32_1 = arith.constant 0 : i32
    return %c0_i32, %c0_i32_0 : i32, i32
  }
  func.func @transform_3(%arg0: i32) -> (i32, i32) {
    %c0_i32 = arith.constant 0 : i32
    %c0_i32_0 = arith.constant 0 : i32
    %c0_i32_1 = arith.constant 0 : i32
    return %c0_i32, %c0_i32_0 : i32, i32
  }
  func.func @transform_4(%arg0: i32) -> (i32, i32) {
    %c0_i32 = arith.constant 0 : i32
    %c0_i32_0 = arith.constant 0 : i32
    %c0_i32_1 = arith.constant 0 : i32
    return %c0_i32, %c0_i32_0 : i32, i32
  }
  func.func @transform_5(%arg0: i32) -> (i32, i32) {
    %c0_i32 = arith.constant 0 : i32
    %c0_i32_0 = arith.constant 0 : i32
    %c0_i32_1 = arith.constant 0 : i32
    return %c0_i32, %c0_i32_0 : i32, i32
  }
  func.func @transform_6(%arg0: i32) -> (i32, i32) {
    %c0_i32 = arith.constant 0 : i32
    %c0_i32_0 = arith.constant 0 : i32
    %c0_i32_1 = arith.constant 0 : i32
    return %c0_i32, %c0_i32_0 : i32, i32
  }
  func.func @transform_7(%arg0: i32) -> (i32, i32) {
    %c0_i32 = arith.constant 0 : i32
    %c0_i32_0 = arith.constant 0 : i32
    return %c0_i32, %arg0 : i32, i32
  }
}

</mosaic_0001>

<llo_original>
// kernel: tpu_custom_call.1
$region0: #{tpu_custom_call.1}
  #allocation0 [shape = 'u32[]', space=smem, size = 0x4, offset = 0x4, fixed_abs, tag = 'smem constant byte address 0x4 - core index']
  #allocation1 [shape = 'u32[144,128]{1,0:T(1,128)}', space=vmem, size = 0x12000, scoped, tag = 'internal scratch']
  %s0 = inlined_call_operand.vmem [shape: f32[16,16], index: 0, kind: input, shape index: {}]
  %s1 = inlined_call_operand.vmem [shape: f32[32,16], index: 1, kind: input, shape index: {}]
  %s2 = inlined_call_operand.vmem [shape: f32[32,1], index: 2, kind: input, shape index: {}]
  %s3 = inlined_call_operand.vmem [shape: f32[32,32], index: 3, kind: input, shape index: {}]
  %s4 = inlined_call_operand.vmem [shape: f32[32,1], index: 4, kind: input, shape index: {}]
  %s5 = inlined_call_operand.vmem [shape: f32[2,32], index: 5, kind: input, shape index: {}]
  %s6 = inlined_call_operand.vmem [shape: f32[2,1], index: 6, kind: input, shape index: {}]
  %s7 = inlined_call_operand.hbm [shape: f32[2,16], index: 7, kind: output, shape index: {}]
  %s8 = sld [smem:[#allocation0]]
  $region38: #{tpu_custom_call.1} parent=0
    _
  %s10 = ssub.s32 1, %s8
  %s11 = scalar_select 0, %s10, %s8
  $region1: #{tpu_custom_call.1} parent=0
    #allocation2 [shape = 'u8[1024]{0}', space=vmem, size = 0x400, scoped, tag = 'output window, operand 0, single buffered']
    #allocation3 [shape = 's32[1]{0}', space=sflag, size = 0x4, scoped, tag = 'scoped memory for tpu_custom_call.1']
    %12 = vsyncpa [#allocation3], 0
    // Predicated region
    $region2: #{tpu_custom_call.1} parent=1 // pred_check
      _
    $region3: #{tpu_custom_call.1} parent=1 // pred_check_branch
      %14 = sbr.rel (0) target = $region5
    $region4: #{tpu_custom_call.1} parent=1 // pred_region
      _
    $region5: #{tpu_custom_call.1} parent=1 // pred_fallthru
      _
    // Predicated region
    $region6: #{tpu_custom_call.1} parent=1 // pred_check
      _
    $region7: #{tpu_custom_call.1} parent=1 // pred_check_branch
      %16 = sbr.rel (0) target = $region9
    $region8: #{tpu_custom_call.1} parent=1 // pred_region
      _
    $region9: #{tpu_custom_call.1} parent=1 // pred_fallthru
      _
    // Predicated region
    $region10: #{tpu_custom_call.1} parent=1 // pred_check
      _
    $region11: #{tpu_custom_call.1} parent=1 // pred_check_branch
      %18 = sbr.rel (0) target = $region13
    $region12: #{tpu_custom_call.1} parent=1 // pred_region
      _
    $region13: #{tpu_custom_call.1} parent=1 // pred_fallthru
      _
    // Predicated region
    $region14: #{tpu_custom_call.1} parent=1 // pred_check
      _
    $region15: #{tpu_custom_call.1} parent=1 // pred_check_branch
      %20 = sbr.rel (0) target = $region17
    $region16: #{tpu_custom_call.1} parent=1 // pred_region
      _
    $region17: #{tpu_custom_call.1} parent=1 // pred_fallthru
      _
    // Predicated region
    $region18: #{tpu_custom_call.1} parent=1 // pred_check
      _
    $region19: #{tpu_custom_call.1} parent=1 // pred_check_branch
      %22 = sbr.rel (0) target = $region21
    $region20: #{tpu_custom_call.1} parent=1 // pred_region
      _
    $region21: #{tpu_custom_call.1} parent=1 // pred_fallthru
      _
    // Predicated region
    $region22: #{tpu_custom_call.1} parent=1 // pred_check
      _
    $region23: #{tpu_custom_call.1} parent=1 // pred_check_branch
      %24 = sbr.rel (0) target = $region25
    $region24: #{tpu_custom_call.1} parent=1 // pred_region
      _
    $region25: #{tpu_custom_call.1} parent=1 // pred_fallthru
      _
    // Predicated region
    $region26: #{tpu_custom_call.1} parent=1 // pred_check
      _
    $region27: #{tpu_custom_call.1} parent=1 // pred_check_branch
      %26 = sbr.rel (0) target = $region29
    $region28: #{tpu_custom_call.1} parent=1 // pred_region
      _
    $region29: #{tpu_custom_call.1} parent=1 // pred_fallthru
      _
    %v27 = vld [vmem:[%s0] sm:$0xff]
    %v28 = vld [vmem:[%s0 + $0x8] sm:$0xff]
    %v29 = vld [vmem:[%s1] sm:$0xff]
    %v30 = vld [vmem:[%s1 + $0x8] sm:$0xff]
    %v31 = vld [vmem:[%s1 + $0x10] sm:$0xff]
    %v32 = vld [vmem:[%s1 + $0x18] sm:$0xff]
    %v33 = vld [vmem:[%s2] sm:$0xff]
    %v34 = vld [vmem:[%s2 + $0x8] sm:$0xff]
    %v35 = vld [vmem:[%s2 + $0x10] sm:$0xff]
    %v36 = vld [vmem:[%s2 + $0x18] sm:$0xff]
    %38 = vset.pattern.permute.xlu0 0
    %39 = vperm.xlu0 %38, %v33
    %v40 = vpop.permute.xlu0 %39
    %43 = vset.pattern.permute.xlu0 0
    %44 = vperm.xlu0 %43, %v34
    %v45 = vpop.permute.xlu0 %44
    %48 = vset.pattern.permute.xlu0 0
    %49 = vperm.xlu0 %48, %v35
    %v50 = vpop.permute.xlu0 %49
    %53 = vset.pattern.permute.xlu0 0
    %54 = vperm.xlu0 %53, %v36
    %v55 = vpop.permute.xlu0 %54
    %vm57 = vcmask 130048
    %v59 = vsel %vm57, %v29, 0
    %v62 = vsel %vm57, %v30, 0
    %v65 = vsel %vm57, %v31, 0
    %v68 = vsel %vm57, %v32, 0
    %70 = vmatprep.subr.mxu0 0.0
    %71 = vmatpush1.msra.mxu0 %v27
    %72 = vmatprep.subr.mxu0 0.0
    %73 = vmatpush1.msra.mxu0 %v28
    %74 = vmatprep.subr.mxu0 0.0
    %75 = vmatpush1.msra.mxu0 0.0
    %76 = vmatprep.subr.mxu0 0.0
    %77 = vmatpush1.msra.mxu0 0.0
    %78 = vmatprep.subr.mxu0 0.0
    %79 = vmatpush1.msra.mxu0 0.0
    %80 = vmatprep.subr.mxu0 0.0
    %81 = vmatpush1.msra.mxu0 0.0
    %82 = vmatprep.subr.mxu0 0.0
    %83 = vmatpush1.msra.mxu0 0.0
    %84 = vmatprep.subr.mxu0 0.0
    %85 = vmatpush1.msra.mxu0 0.0
    %86 = vmatprep.subr.mxu0 0.0
    %87 = vmatpush1.msra.mxu0 0.0
    %88 = vmatprep.subr.mxu0 0.0
    %89 = vmatpush1.msra.mxu0 0.0
    %90 = vmatprep.subr.mxu0 0.0
    %91 = vmatpush1.msra.mxu0 0.0
    %92 = vmatprep.subr.mxu0 0.0
    %93 = vmatpush1.msra.mxu0 0.0
    %94 = vmatprep.subr.mxu0 0.0
    %95 = vmatpush1.msra.mxu0 0.0
    %96 = vmatprep.subr.mxu0 0.0
    %97 = vmatpush1.msra.mxu0 0.0
    %98 = vmatprep.subr.mxu0 0.0
    %99 = vmatpush1.msra.mxu0 0.0
    %100 = vmatprep.subr.mxu0 0.0
    %101 = vmatpush1.msra.mxu0 0.0
    %102 = vmatprep.subr.mxu0 0.0
    %103 = vmatpush1.msra.mxu0 0.0
    %104 = vmatprep.subr.mxu0 0.0
    %105 = vmatpush1.msra.mxu0 0.0
    %106 = vmatprep.subr.mxu0 0.0
    %107 = vmatpush1.msra.mxu0 0.0
    %108 = vmatprep.subr.mxu0 0.0
    %109 = vmatpush1.msra.mxu0 0.0
    %110 = vmatprep.subr.mxu0 0.0
    %111 = vmatpush1.msra.mxu0 0.0
    %112 = vmatprep.subr.mxu0 0.0
    %113 = vmatpush1.msra.mxu0 0.0
    %114 = vmatprep.subr.mxu0 0.0
    %115 = vmatpush1.msra.mxu0 0.0
    %116 = vmatprep.subr.mxu0 0.0
    %117 = vmatpush1.msra.mxu0 0.0
    %118 = vmatprep.subr.mxu0 0.0
    %119 = vmatpush1.msra.mxu0 0.0
    %120 = vmatprep.subr.mxu0 0.0
    %121 = vmatpush1.msra.mxu0 0.0
    %122 = vmatprep.subr.mxu0 0.0
    %123 = vmatpush1.msra.mxu0 0.0
    %124 = vmatprep.subr.mxu0 0.0
    %125 = vmatpush1.msra.mxu0 0.0
    %126 = vmatprep.subr.mxu0 0.0
    %127 = vmatpush1.msra.mxu0 0.0
    %128 = vmatprep.subr.mxu0 0.0
    %129 = vmatpush1.msra.mxu0 0.0
    %130 = vmatprep.subr.mxu0 0.0
    %131 = vmatpush1.msra.mxu0 0.0
    %132 = vmatprep.subr.mxu0 0.0
    %133 = vmatpush1.msra.mxu0 0.0
    %134 = vmatprep.mubr.f32.mxu0 0.0
    %135 = vmatmul.mubr.f32.gmra.mrb[0].mxu0 %v59
    %v136 = vpop.f32.mrb[0].mxu0
    %v137 = vadd.f32 %v40, %v136
    %v138 = vpop.f32.mrb[0].mxu0
    %139 = vmatprep.mubr.f32.mxu0 0.0
    %140 = vmatmul.mubr.f32.gmra.mrb[0].mxu0 %v62
    %v141 = vpop.f32.mrb[0].mxu0
    %v142 = vadd.f32 %v45, %v141
    %v143 = vpop.f32.mrb[0].mxu0
    %144 = vmatprep.mubr.f32.mxu0 0.0
    %145 = vmatmul.mubr.f32.gmra.mrb[0].mxu0 %v65
    %v146 = vpop.f32.mrb[0].mxu0
    %v147 = vadd.f32 %v50, %v146
    %v148 = vpop.f32.mrb[0].mxu0
    %149 = vmatprep.mubr.f32.mxu0 0.0
    %150 = vmatmul.mubr.f32.gmra.mrb[0].mxu0 %v68
    %v151 = vpop.f32.mrb[0].mxu0
    %v152 = vadd.f32 %v55, %v151
    %v153 = vpop.f32.mrb[0].mxu0
    %154 = vdwg.mxu0
    %v155 = vmax.f32 %v137, 0.0
    %v156 = vmax.f32 %v142, 0.0
    %v157 = vmax.f32 %v147, 0.0
    %v158 = vmax.f32 %v152, 0.0
    %v159 = vld [vmem:[%s3] sm:$0xff]
    %v160 = vld [vmem:[%s3 + $0x8] sm:$0xff]
    %v161 = vld [vmem:[%s3 + $0x10] sm:$0xff]
    %v162 = vld [vmem:[%s3 + $0x18] sm:$0xff]
    %v163 = vld [vmem:[%s4] sm:$0xff]
    %v164 = vld [vmem:[%s4 + $0x8] sm:$0xff]
    %v165 = vld [vmem:[%s4 + $0x10] sm:$0xff]
    %v166 = vld [vmem:[%s4 + $0x18] sm:$0xff]
    %168 = vset.pattern.permute.xlu0 0
    %169 = vperm.xlu0 %168, %v163
    %v170 = vpop.permute.xlu0 %169
    %173 = vset.pattern.permute.xlu0 0
    %174 = vperm.xlu0 %173, %v164
    %v175 = vpop.permute.xlu0 %174
    %178 = vset.pattern.permute.xlu0 0
    %179 = vperm.xlu0 %178, %v165
    %v180 = vpop.permute.xlu0 %179
    %183 = vset.pattern.permute.xlu0 0
    %184 = vperm.xlu0 %183, %v166
    %v185 = vpop.permute.xlu0 %184
    %vm187 = vcmask 261120
    %v189 = vsel %vm187, %v159, 0
    %v192 = vsel %vm187, %v160, 0
    %v195 = vsel %vm187, %v161, 0
    %v198 = vsel %vm187, %v162, 0
    %200 = vmatprep.subr.mxu0 0.0
    %201 = vmatpush1.msra.mxu0 %v155
    %202 = vmatprep.subr.mxu0 0.0
    %203 = vmatpush1.msra.mxu0 %v156
    %204 = vmatprep.subr.mxu0 0.0
    %205 = vmatpush1.msra.mxu0 %v157
    %206 = vmatprep.subr.mxu0 0.0
    %207 = vmatpush1.msra.mxu0 %v158
    %208 = vmatprep.subr.mxu0 0.0
    %209 = vmatpush1.msra.mxu0 0.0
    %210 = vmatprep.subr.mxu0 0.0
    %211 = vmatpush1.msra.mxu0 0.0
    %212 = vmatprep.subr.mxu0 0.0
    %213 = vmatpush1.msra.mxu0 0.0
    %214 = vmatprep.subr.mxu0 0.0
    %215 = vmatpush1.msra.mxu0 0.0
    %216 = vmatprep.subr.mxu0 0.0
    %217 = vmatpush1.msra.mxu0 0.0
    %218 = vmatprep.subr.mxu0 0.0
    %219 = vmatpush1.msra.mxu0 0.0
    %220 = vmatprep.subr.mxu0 0.0
    %221 = vmatpush1.msra.mxu0 0.0
    %222 = vmatprep.subr.mxu0 0.0
    %223 = vmatpush1.msra.mxu0 0.0
    %224 = vmatprep.subr.mxu0 0.0
    %225 = vmatpush1.msra.mxu0 0.0
    %226 = vmatprep.subr.mxu0 0.0
    %227 = vmatpush1.msra.mxu0 0.0
    %228 = vmatprep.subr.mxu0 0.0
    %229 = vmatpush1.msra.mxu0 0.0
    %230 = vmatprep.subr.mxu0 0.0
    %231 = vmatpush1.msra.mxu0 0.0
    %232 = vmatprep.subr.mxu0 0.0
    %233 = vmatpush1.msra.mxu0 0.0
    %234 = vmatprep.subr.mxu0 0.0
    %235 = vmatpush1.msra.mxu0 0.0
    %236 = vmatprep.subr.mxu0 0.0
    %237 = vmatpush1.msra.mxu0 0.0
    %238 = vmatprep.subr.mxu0 0.0
    %239 = vmatpush1.msra.mxu0 0.0
    %240 = vmatprep.subr.mxu0 0.0
    %241 = vmatpush1.msra.mxu0 0.0
    %242 = vmatprep.subr.mxu0 0.0
    %243 = vmatpush1.msra.mxu0 0.0
    %244 = vmatprep.subr.mxu0 0.0
    %245 = vmatpush1.msra.mxu0 0.0
    %246 = vmatprep.subr.mxu0 0.0
    %247 = vmatpush1.msra.mxu0 0.0
    %248 = vmatprep.subr.mxu0 0.0
    %249 = vmatpush1.msra.mxu0 0.0
    %250 = vmatprep.subr.mxu0 0.0
    %251 = vmatpush1.msra.mxu0 0.0
    %252 = vmatprep.subr.mxu0 0.0
    %253 = vmatpush1.msra.mxu0 0.0
    %254 = vmatprep.subr.mxu0 0.0
    %255 = vmatpush1.msra.mxu0 0.0
    %256 = vmatprep.subr.mxu0 0.0
    %257 = vmatpush1.msra.mxu0 0.0
    %258 = vmatprep.subr.mxu0 0.0
    %259 = vmatpush1.msra.mxu0 0.0
    %260 = vmatprep.subr.mxu0 0.0
    %261 = vmatpush1.msra.mxu0 0.0
    %262 = vmatprep.subr.mxu0 0.0
    %263 = vmatpush1.msra.mxu0 0.0
    %264 = vmatprep.mubr.f32.mxu0 0.0
    %265 = vmatmul.mubr.f32.gmra.mrb[0].mxu0 %v189
    %v266 = vpop.f32.mrb[0].mxu0
    %v267 = vadd.f32 %v170, %v266
    %v268 = vpop.f32.mrb[0].mxu0
    %269 = vmatprep.mubr.f32.mxu0 0.0
    %270 = vmatmul.mubr.f32.gmra.mrb[0].mxu0 %v192
    %v271 = vpop.f32.mrb[0].mxu0
    %v272 = vadd.f32 %v175, %v271
    %v273 = vpop.f32.mrb[0].mxu0
    %274 = vmatprep.mubr.f32.mxu0 0.0
    %275 = vmatmul.mubr.f32.gmra.mrb[0].mxu0 %v195
    %v276 = vpop.f32.mrb[0].mxu0
    %v277 = vadd.f32 %v180, %v276
    %v278 = vpop.f32.mrb[0].mxu0
    %279 = vmatprep.mubr.f32.mxu0 0.0
    %280 = vmatmul.mubr.f32.gmra.mrb[0].mxu0 %v198
    %v281 = vpop.f32.mrb[0].mxu0
    %v282 = vadd.f32 %v185, %v281
    %v283 = vpop.f32.mrb[0].mxu0
    %284 = vdwg.mxu0
    %v285 = vmax.f32 %v267, 0.0
    %v286 = vmax.f32 %v272, 0.0
    %v287 = vmax.f32 %v277, 0.0
    %v288 = vmax.f32 %v282, 0.0
    %v289 = vld [vmem:[%s5] sm:$0x3]
    %v290 = vld [vmem:[%s6] sm:$0x3]
    %292 = vset.pattern.permute.xlu0 0
    %293 = vperm.xlu0 %292, %v290
    %v294 = vpop.permute.xlu0 %293
    %v297 = vsel %vm187, %v289, 0
    %299 = vmatprep.subr.mxu0 0.0
    %300 = vmatpush1.msra.mxu0 %v285
    %301 = vmatprep.subr.mxu0 0.0
    %302 = vmatpush1.msra.mxu0 %v286
    %303 = vmatprep.subr.mxu0 0.0
    %304 = vmatpush1.msra.mxu0 %v287
    %305 = vmatprep.subr.mxu0 0.0
    %306 = vmatpush1.msra.mxu0 %v288
    %307 = vmatprep.subr.mxu0 0.0
    %308 = vmatpush1.msra.mxu0 0.0
    %309 = vmatprep.subr.mxu0 0.0
    %310 = vmatpush1.msra.mxu0 0.0
    %311 = vmatprep.subr.mxu0 0.0
    %312 = vmatpush1.msra.mxu0 0.0
    %313 = vmatprep.subr.mxu0 0.0
    %314 = vmatpush1.msra.mxu0 0.0
    %315 = vmatprep.subr.mxu0 0.0
    %316 = vmatpush1.msra.mxu0 0.0
    %317 = vmatprep.subr.mxu0 0.0
    %318 = vmatpush1.msra.mxu0 0.0
    %319 = vmatprep.subr.mxu0 0.0
    %320 = vmatpush1.msra.mxu0 0.0
    %321 = vmatprep.subr.mxu0 0.0
    %322 = vmatpush1.msra.mxu0 0.0
    %323 = vmatprep.subr.mxu0 0.0
    %324 = vmatpush1.msra.mxu0 0.0
    %325 = vmatprep.subr.mxu0 0.0
    %326 = vmatpush1.msra.mxu0 0.0
    %327 = vmatprep.subr.mxu0 0.0
    %328 = vmatpush1.msra.mxu0 0.0
    %329 = vmatprep.subr.mxu0 0.0
    %330 = vmatpush1.msra.mxu0 0.0
    %331 = vmatprep.subr.mxu0 0.0
    %332 = vmatpush1.msra.mxu0 0.0
    %333 = vmatprep.subr.mxu0 0.0
    %334 = vmatpush1.msra.mxu0 0.0
    %335 = vmatprep.subr.mxu0 0.0
    %336 = vmatpush1.msra.mxu0 0.0
    %337 = vmatprep.subr.mxu0 0.0
    %338 = vmatpush1.msra.mxu0 0.0
    %339 = vmatprep.subr.mxu0 0.0
    %340 = vmatpush1.msra.mxu0 0.0
    %341 = vmatprep.subr.mxu0 0.0
    %342 = vmatpush1.msra.mxu0 0.0
    %343 = vmatprep.subr.mxu0 0.0
    %344 = vmatpush1.msra.mxu0 0.0
    %345 = vmatprep.subr.mxu0 0.0
    %346 = vmatpush1.msra.mxu0 0.0
    %347 = vmatprep.subr.mxu0 0.0
    %348 = vmatpush1.msra.mxu0 0.0
    %349 = vmatprep.subr.mxu0 0.0
    %350 = vmatpush1.msra.mxu0 0.0
    %351 = vmatprep.subr.mxu0 0.0
    %352 = vmatpush1.msra.mxu0 0.0
    %353 = vmatprep.subr.mxu0 0.0
    %354 = vmatpush1.msra.mxu0 0.0
    %355 = vmatprep.subr.mxu0 0.0
    %356 = vmatpush1.msra.mxu0 0.0
    %357 = vmatprep.subr.mxu0 0.0
    %358 = vmatpush1.msra.mxu0 0.0
    %359 = vmatprep.subr.mxu0 0.0
    %360 = vmatpush1.msra.mxu0 0.0
    %361 = vmatprep.subr.mxu0 0.0
    %362 = vmatpush1.msra.mxu0 0.0
    %363 = vmatprep.mubr.f32.mxu0 0.0
    %364 = vmatmul.mubr.f32.gmra.mrb[0].mxu0 %v297
    %v365 = vpop.f32.mrb[0].mxu0
    %v366 = vadd.f32 %v294, %v365
    %v367 = vpop.f32.mrb[0].mxu0
    %368 = vdwg.mxu0
    %v370 = vrot.slane %v366, 7
    %v372 = vsub.f32 %v366, %v370
    %v373 = vsub.f32 0.0, %v372
    %v374 = vmul.f32 %v373, 1.442695
    %v375 = vpow.pop %v374
    %v376 = vadd.f32 %v375, 1.0
    %v377 = vrcp.pop %v376
    %v378 = vmul.f32 1.0, %v377
    %v379 = vsub.f32 1.0, %v378
    %vm380 = vcmask 123905
    %381 = vst.msk [vmem:[#allocation2 - $0x1] sm:$0x2] %vm380, %v379
    %382 = vst.msk [vmem:[#allocation2] sm:$0x2] %vm380, %v378
    // Predicated region
    $region30: #{tpu_custom_call.1} parent=1 // pred_check
      _
    $region31: #{tpu_custom_call.1} parent=1 // pred_check_branch
      %384 = sbr.rel (0) target = $region33
    $region32: #{tpu_custom_call.1} parent=1 // pred_region
      %s386 = ssub.s32 32, 32
      %387 = vsyncadd [#allocation3], %s386
      %s389 = sshll.u32 [#allocation2], 4
      %s390 = int_to_ptr.vmem [resolvable:$true] %s389
      %392 = dma.vmem_to_hbm [thread:$0]  %s390, 32, %s7, [#allocation3]
    $region33: #{tpu_custom_call.1} parent=1 // pred_fallthru
      _
    // Predicated region
    $region34: #{tpu_custom_call.1} parent=1 // pred_check
      _
    $region35: #{tpu_custom_call.1} parent=1 // pred_check_branch
      %394 = sbr.rel (0) target = $region37
    $region36: #{tpu_custom_call.1} parent=1 // pred_region
      %395 = dma.done [#allocation3], 32
    $region37: #{tpu_custom_call.1} parent=1 // pred_fallthru
      _
    %396 = vsyncpa [#allocation3], 1

</llo_original>
